<compile_context>
chip_gen: v6e
topology: v6e:2x2x1
jax: 0.10.0
libtpu: 0.0.40
codegen_flags: <defaults>
</compile_context>

<pallas_src>
import functools
import math

import jax
import jax.numpy as jnp
from jax.experimental import pallas as pl
from jax.experimental.pallas import tpu as pltpu


_VMEM_TARGET_BYTES = 48 * 1024 * 1024   # conservative: fits v7x's 64 MiB physical VMEM


def _round_up(x, m):
    return ((x + m - 1) // m) * m


# ---------------------------------------------------------------------------
# Kernel: fused 3-layer MLP + softplus(out + bias)
# ---------------------------------------------------------------------------
def _decoder_mlp_kernel(x_ref, w1_ref, b1_ref, w2_ref, b2_ref, w3_ref, b3_ref,
                        o_ref, *, bias):
    cdt = w1_ref.dtype          # compute dtype for the MXU (f32 or bf16)

    x = x_ref[...]              # (row_tile, zd), already in compute dtype

    # layer 1: Linear + ReLU   (f32 accumulate, f32 epilogue on the VPU)
    h1 = jnp.dot(x, w1_ref[...], preferred_element_type=jnp.float32) + b1_ref[...]
    h1 = jnp.maximum(h1, 0.0)

    # layer 2: Linear + ReLU
    h2 = jnp.dot(h1.astype(cdt), w2_ref[...],
                 preferred_element_type=jnp.float32) + b2_ref[...]
    h2 = jnp.maximum(h2, 0.0)

    # output layer: Linear (column slice of W3 when column-tiled)
    out = jnp.dot(h2.astype(cdt), w3_ref[...],
                  preferred_element_type=jnp.float32) + b3_ref[...]

    # softplus(out + bias) -- numerically stable, log1p form (VPU + EUP only)
    z = out + bias
    sp = jnp.maximum(z, 0.0) + jnp.log1p(jnp.exp(-jnp.abs(z)))
    o_ref[...] = sp.astype(o_ref.dtype)


def decoder_forward(z_what, params, img_dim, bias=-2.0, *,
                    row_tile=256, col_tile=None,
                    compute_dtype=jnp.float32, out_dtype=jnp.float32):
    """z_what: [B, N, z_what_dim]  ->  [B, N, *img_dim]

    row_tile:      rows of z_what processed per grid step (clamped / padded).
    col_tile:      optional tile over the output feature dim (multiple of 128);
                   None => the full out_dim is produced per step.
    compute_dtype: dtype fed to the MXU (bf16 recommended on v6e/v7x).
    """
    w1, b1, w2, b2, w3, b3 = params
    B, N, zd = z_what.shape
    hidden = w1.shape[1]
    out_dim = w3.shape[1]
    assert out_dim == math.prod(img_dim)

    # ---- column tiling (only matters for large out_dim) --------------------
    if col_tile is None or col_tile >= out_dim:
        ct = out_dim
        out_pad = out_dim
    else:
        ct = _round_up(col_tile, 128)          # lane-dense output stores
        out_pad = _round_up(out_dim, ct)

    # ---- row tiling: big tiles, padded rows, sized against a VMEM budget ---
    M = B * N
    rt = max(8, min(_round_up(row_tile, 8), _round_up(M, 8)))

    cbytes = jnp.dtype(compute_dtype).itemsize
    obytes = jnp.dtype(out_dtype).itemsize

    def vmem_est(r):
        # resident weights/biases + x/out tiles; conservatively assume the
        # pipeline double-buffers everything.
        wbytes = (zd * hidden + hidden * hidden + hidden * ct) * cbytes \
                 + (2 * hidden + ct) * 4
        tbytes = r * zd * cbytes + r * ct * obytes
        return 2 * (wbytes + tbytes)

    while rt > 8 and vmem_est(rt) > _VMEM_TARGET_BYTES:
        rt = _round_up(rt // 2, 8)

    M_pad = _round_up(M, rt)
    vmem_limit = int(min(max(1.5 * vmem_est(rt), 32 * 1024 * 1024),
                         64 * 1024 * 1024))

    # ---- prepare operands ---------------------------------------------------
    x = z_what.reshape(M, zd).astype(compute_dtype)
    if M_pad != M:
        x = jnp.pad(x, ((0, M_pad - M), (0, 0)))

    w1c = w1.astype(compute_dtype)
    w2c = w2.astype(compute_dtype)
    w3c = w3.astype(compute_dtype)
    # biases stay f32 (added to the f32 accumulator), shaped (1, dim) so they
    # broadcast against (row_tile, dim) tiles.
    b1r = b1.reshape(1, hidden).astype(jnp.float32)
    b2r = b2.reshape(1, hidden).astype(jnp.float32)
    b3r = b3.reshape(1, out_dim).astype(jnp.float32)
    if out_pad != out_dim:
        w3c = jnp.pad(w3c, ((0, 0), (0, out_pad - out_dim)))
        b3r = jnp.pad(b3r, ((0, 0), (0, out_pad - out_dim)))

    grid = (M_pad // rt, out_pad // ct)

    out_flat = pl.pallas_call(
        functools.partial(_decoder_mlp_kernel, bias=float(bias)),
        out_shape=jax.ShapeDtypeStruct((M_pad, out_pad), out_dtype),
        grid_spec=pltpu.PrefetchScalarGridSpec(
            num_scalar_prefetch=0,
            grid=grid,
            in_specs=[
                pl.BlockSpec((rt, zd),         lambda i, j: (i, 0)),  # x rows
                pl.BlockSpec((zd, hidden),     lambda i, j: (0, 0)),  # W1 (resident)
                pl.BlockSpec((1, hidden),      lambda i, j: (0, 0)),  # b1
                pl.BlockSpec((hidden, hidden), lambda i, j: (0, 0)),  # W2 (resident)
                pl.BlockSpec((1, hidden),      lambda i, j: (0, 0)),  # b2
                pl.BlockSpec((hidden, ct),     lambda i, j: (0, j)),  # W3 column slice
                pl.BlockSpec((1, ct),          lambda i, j: (0, j)),  # b3 column slice
            ],
            out_specs=pl.BlockSpec((rt, ct),   lambda i, j: (i, j)),
        ),
        compiler_params=pltpu.CompilerParams(
            dimension_semantics=("parallel", "parallel"),
            vmem_limit_bytes=vmem_limit,
        ),
    )(x, w1c, b1r, w2c, b2r, w3c, b3r)

    out_flat = out_flat[:M, :out_dim]
    return out_flat.reshape(B, N, *img_dim)


# ---------------------------------------------------------------------------
# Deterministic parameter init (synthetic; mimics the module's shapes)
# ---------------------------------------------------------------------------
def init_decoder_params(key, z_what_dim, hidden_dim, out_dim):
    ks = jax.random.split(key, 6)
    s1 = 1.0 / jnp.sqrt(z_what_dim)
    s2 = 1.0 / jnp.sqrt(hidden_dim)
    w1 = jax.random.uniform(ks[0], (z_what_dim, hidden_dim), jnp.float32, -s1, s1)
    b1 = jax.random.uniform(ks[1], (hidden_dim,), jnp.float32, -s1, s1)
    w2 = jax.random.uniform(ks[2], (hidden_dim, hidden_dim), jnp.float32, -s2, s2)
    b2 = jax.random.uniform(ks[3], (hidden_dim,), jnp.float32, -s2, s2)
    w3 = jax.random.uniform(ks[4], (hidden_dim, out_dim), jnp.float32, -s2, s2)
    b3 = jax.random.uniform(ks[5], (out_dim,), jnp.float32, -s2, s2)
    return (w1, b1, w2, b2, w3, b3)


def decoder_reference(z_what, params, img_dim, bias=-2.0,
                      compute_dtype=jnp.float32):
    """Pure-JAX reference (mirrors the kernel's compute dtype)."""
    w1, b1, w2, b2, w3, b3 = params
    B, N, _ = z_what.shape
    x = z_what.reshape(B * N, -1).astype(compute_dtype)
    h1 = jnp.maximum(jnp.dot(x, w1.astype(compute_dtype),
                             preferred_element_type=jnp.float32) + b1, 0.0)
    h2 = jnp.maximum(jnp.dot(h1.astype(compute_dtype), w2.astype(compute_dtype),
                             preferred_element_type=jnp.float32) + b2, 0.0)
    out = jnp.dot(h2.astype(compute_dtype), w3.astype(compute_dtype),
                  preferred_element_type=jnp.float32) + b3
    return jax.nn.softplus(out + bias).reshape(B, N, *img_dim)


if __name__ == "__main__":
    # Small, module-consistent shapes: z_what_dim=32, img_dim=[1,16,16],
    # hidden_dim=32, batch=2, N=8 objects per image.
    z_what_dim = 32
    img_dim = (1, 16, 16)
    hidden_dim = 32
    out_dim = img_dim[0] * img_dim[1] * img_dim[2]   # 256
    bias = -2.0
    B, N = 2, 8

    key = jax.random.PRNGKey(0)
    k_param, k_x, k_x2 = jax.random.split(key, 3)
    params = init_decoder_params(k_param, z_what_dim, hidden_dim, out_dim)
    z_what = jax.random.normal(k_x, (B, N, z_what_dim), dtype=jnp.float32)

    # 1) f32 path (default): tight tolerance vs. pure-JAX reference.
    out = decoder_forward(z_what, params, img_dim, bias=bias)
    out = jax.block_until_ready(out)
    ref = decoder_reference(z_what, params, img_dim, bias=bias)
    assert out.shape == (B, N, *img_dim), out.shape
    assert jnp.allclose(out, ref, atol=1e-5, rtol=1e-5), "f32 path mismatch"

    # 2) Non-divisible row count: exercises the row-padding path.
    z_what2 = jax.random.normal(k_x2, (3, 5, z_what_dim), dtype=jnp.float32)
    out2 = jax.block_until_ready(
        decoder_forward(z_what2, params, img_dim, bias=bias))
    ref2 = decoder_reference(z_what2, params, img_dim, bias=bias)
    assert out2.shape == (3, 5, *img_dim)
    assert jnp.allclose(out2, ref2, atol=1e-5, rtol=1e-5), "padded-row mismatch"

    # 3) Column-tiled path (2-D grid over output features).
    out3 = jax.block_until_ready(
        decoder_forward(z_what, params, img_dim, bias=bias, col_tile=128))
    assert jnp.allclose(out3, ref, atol=1e-5, rtol=1e-5), "col-tiled mismatch"

    # 4) bf16 compute path (recommended on v6e/v7x): compare against a bf16
    #    reference, looser tolerance.
    out_bf16 = jax.block_until_ready(
        decoder_forward(z_what, params, img_dim, bias=bias,
                        compute_dtype=jnp.bfloat16))
    ref_bf16 = decoder_reference(z_what, params, img_dim, bias=bias,
                                 compute_dtype=jnp.bfloat16)
    assert jnp.allclose(out_bf16, ref_bf16, atol=1e-2, rtol=1e-2), \
        "bf16 path mismatch"

    print("KERNEL_OK")
</pallas_src>

<mosaic_0001>
module attributes {stable_mosaic.version = 11 : i64} {
  func.func @_decoder_mlp_kernel(%arg0: i32, %arg1: i32, %arg2: memref<16x32xf32, #tpu.memory_space<vmem>>, %arg3: memref<32x32xf32, #tpu.memory_space<vmem>>, %arg4: memref<1x32xf32, #tpu.memory_space<vmem>>, %arg5: memref<32x32xf32, #tpu.memory_space<vmem>>, %arg6: memref<1x32xf32, #tpu.memory_space<vmem>>, %arg7: memref<32x256xf32, #tpu.memory_space<vmem>>, %arg8: memref<1x256xf32, #tpu.memory_space<vmem>>, %arg9: memref<16x256xf32, #tpu.memory_space<vmem>>) attributes {dimension_semantics = [#tpu.dimension_semantics<parallel>, #tpu.dimension_semantics<parallel>], iteration_bounds = array<i64: 1, 1>, scalar_prefetch = 0 : i64, scratch_operands = 0 : i64, tpu.core_type = #tpu.core_type<tc>, window_params = [{transform_indices = @transform_0, window_bounds = array<i64: 16, 32>}, {pipeline_mode = #tpu.pipeline_mode<synchronous>, transform_indices = @transform_1, window_bounds = array<i64: 32, 32>}, {pipeline_mode = #tpu.pipeline_mode<synchronous>, transform_indices = @transform_2, window_bounds = array<i64: 1, 32>}, {pipeline_mode = #tpu.pipeline_mode<synchronous>, transform_indices = @transform_3, window_bounds = array<i64: 32, 32>}, {pipeline_mode = #tpu.pipeline_mode<synchronous>, transform_indices = @transform_4, window_bounds = array<i64: 1, 32>}, {transform_indices = @transform_5, window_bounds = array<i64: 32, 256>}, {transform_indices = @transform_6, window_bounds = array<i64: 1, 256>}, {transform_indices = @transform_7, window_bounds = array<i64: 16, 256>}]} {
    %c0 = arith.constant 0 : index
    %c0_0 = arith.constant 0 : index
    %0 = vector.load %arg2[%c0, %c0_0] : memref<16x32xf32, #tpu.memory_space<vmem>>, vector<16x32xf32>
    %c0_1 = arith.constant 0 : index
    %c0_2 = arith.constant 0 : index
    %1 = vector.load %arg3[%c0_1, %c0_2] : memref<32x32xf32, #tpu.memory_space<vmem>>, vector<32x32xf32>
    %cst = arith.constant dense<0.000000e+00> : vector<16x32xf32>
    %2 = tpu.matmul %0, %1, %cst {dimension_numbers = #tpu.dot_dimension_numbers<[1], [0], [0], [1], [0, 0, 1, 1], [], []>} : vector<16x32xf32>, vector<32x32xf32>, vector<16x32xf32> -> vector<16x32xf32>
    %c0_3 = arith.constant 0 : index
    %c0_4 = arith.constant 0 : index
    %3 = vector.load %arg4[%c0_3, %c0_4] : memref<1x32xf32, #tpu.memory_space<vmem>>, vector<1x32xf32>
    %4 = vector.broadcast %3 : vector<1x32xf32> to vector<16x32xf32>
    %5 = arith.addf %2, %4 : vector<16x32xf32>
    %cst_5 = arith.constant 0.000000e+00 : f32
    %6 = vector.broadcast %cst_5 : f32 to vector<16x32xf32>
    %7 = arith.maximumf %5, %6 : vector<16x32xf32>
    %c0_6 = arith.constant 0 : index
    %c0_7 = arith.constant 0 : index
    %8 = vector.load %arg5[%c0_6, %c0_7] : memref<32x32xf32, #tpu.memory_space<vmem>>, vector<32x32xf32>
    %cst_8 = arith.constant dense<0.000000e+00> : vector<16x32xf32>
    %9 = tpu.matmul %7, %8, %cst_8 {dimension_numbers = #tpu.dot_dimension_numbers<[1], [0], [0], [1], [0, 0, 1, 1], [], []>} : vector<16x32xf32>, vector<32x32xf32>, vector<16x32xf32> -> vector<16x32xf32>
    %c0_9 = arith.constant 0 : index
    %c0_10 = arith.constant 0 : index
    %10 = vector.load %arg6[%c0_9, %c0_10] : memref<1x32xf32, #tpu.memory_space<vmem>>, vector<1x32xf32>
    %11 = vector.broadcast %10 : vector<1x32xf32> to vector<16x32xf32>
    %12 = arith.addf %9, %11 : vector<16x32xf32>
    %cst_11 = arith.constant 0.000000e+00 : f32
    %13 = vector.broadcast %cst_11 : f32 to vector<16x32xf32>
    %14 = arith.maximumf %12, %13 : vector<16x32xf32>
    %c0_12 = arith.constant 0 : index
    %c0_13 = arith.constant 0 : index
    %15 = vector.load %arg7[%c0_12, %c0_13] : memref<32x256xf32, #tpu.memory_space<vmem>>, vector<32x256xf32>
    %cst_14 = arith.constant dense<0.000000e+00> : vector<16x256xf32>
    %16 = tpu.matmul %14, %15, %cst_14 {dimension_numbers = #tpu.dot_dimension_numbers<[1], [0], [0], [1], [0, 0, 1, 1], [], []>} : vector<16x32xf32>, vector<32x256xf32>, vector<16x256xf32> -> vector<16x256xf32>
    %c0_15 = arith.constant 0 : index
    %c0_16 = arith.constant 0 : index
    %17 = vector.load %arg8[%c0_15, %c0_16] : memref<1x256xf32, #tpu.memory_space<vmem>>, vector<1x256xf32>
    %18 = vector.broadcast %17 : vector<1x256xf32> to vector<16x256xf32>
    %19 = arith.addf %16, %18 : vector<16x256xf32>
    %cst_17 = arith.constant -2.000000e+00 : f32
    %20 = vector.broadcast %cst_17 : f32 to vector<16x256xf32>
    %21 = arith.addf %19, %20 : vector<16x256xf32>
    %cst_18 = arith.constant 0.000000e+00 : f32
    %22 = vector.broadcast %cst_18 : f32 to vector<16x256xf32>
    %23 = arith.maximumf %21, %22 : vector<16x256xf32>
    %24 = math.absf %21 : vector<16x256xf32>
    %cst_19 = arith.constant 0.000000e+00 : f32
    %25 = vector.broadcast %cst_19 : f32 to vector<16x256xf32>
    %26 = arith.subf %25, %24 : vector<16x256xf32>
    %27 = math.exp %26 : vector<16x256xf32>
    %28 = math.log1p %27 : vector<16x256xf32>
    %29 = arith.addf %23, %28 : vector<16x256xf32>
    %c0_20 = arith.constant 0 : index
    %c0_21 = arith.constant 0 : index
    %30 = vector.load %arg9[%c0_20, %c0_21] : memref<16x256xf32, #tpu.memory_space<vmem>>, vector<16x256xf32>
    tpu.vector_store %arg9[%c0_20, %c0_21], %29 {strides = array<i32>} : memref<16x256xf32, #tpu.memory_space<vmem>>, vector<16x256xf32>,
    return
  }
  func.func @transform_0(%arg0: i32, %arg1: i32) -> (i32, i32) {
    %c0_i32 = arith.constant 0 : i32
    %c0_i32_0 = arith.constant 0 : i32
    return %arg0, %c0_i32 : i32, i32
  }
  func.func @transform_1(%arg0: i32, %arg1: i32) -> (i32, i32) {
    %c0_i32 = arith.constant 0 : i32
    %c0_i32_0 = arith.constant 0 : i32
    %c0_i32_1 = arith.constant 0 : i32
    return %c0_i32, %c0_i32_0 : i32, i32
  }
  func.func @transform_2(%arg0: i32, %arg1: i32) -> (i32, i32) {
    %c0_i32 = arith.constant 0 : i32
    %c0_i32_0 = arith.constant 0 : i32
    %c0_i32_1 = arith.constant 0 : i32
    return %c0_i32, %c0_i32_0 : i32, i32
  }
  func.func @transform_3(%arg0: i32, %arg1: i32) -> (i32, i32) {
    %c0_i32 = arith.constant 0 : i32
    %c0_i32_0 = arith.constant 0 : i32
    %c0_i32_1 = arith.constant 0 : i32
    return %c0_i32, %c0_i32_0 : i32, i32
  }
  func.func @transform_4(%arg0: i32, %arg1: i32) -> (i32, i32) {
    %c0_i32 = arith.constant 0 : i32
    %c0_i32_0 = arith.constant 0 : i32
    %c0_i32_1 = arith.constant 0 : i32
    return %c0_i32, %c0_i32_0 : i32, i32
  }
  func.func @transform_5(%arg0: i32, %arg1: i32) -> (i32, i32) {
    %c0_i32 = arith.constant 0 : i32
    %c0_i32_0 = arith.constant 0 : i32
    return %c0_i32, %arg1 : i32, i32
  }
  func.func @transform_6(%arg0: i32, %arg1: i32) -> (i32, i32) {
    %c0_i32 = arith.constant 0 : i32
    %c0_i32_0 = arith.constant 0 : i32
    return %c0_i32, %arg1 : i32, i32
  }
  func.func @transform_7(%arg0: i32, %arg1: i32) -> (i32, i32) {
    %c0_i32 = arith.constant 0 : i32
    return %arg0, %arg1 : i32, i32
  }
}

</mosaic_0001>

<llo_original>
// kernel: tpu_custom_call.1
$region0: #{tpu_custom_call.1}
  #allocation0 [shape = 'u32[]', space=smem, size = 0x4, offset = 0x4, fixed_abs, tag = 'smem constant byte address 0x4 - core index']
  #allocation1 [shape = 'u32[144,128]{1,0:T(1,128)}', space=vmem, size = 0x12000, scoped, tag = 'internal scratch']
  %s0 = inlined_call_operand.hbm [shape: f32[16,32], index: 0, kind: input, shape index: {}]
  %s1 = inlined_call_operand.hbm [shape: f32[32,32], index: 1, kind: input, shape index: {}]
  %s2 = inlined_call_operand.vmem [shape: f32[1,32], index: 2, kind: input, shape index: {}]
  %s3 = inlined_call_operand.hbm [shape: f32[32,32], index: 3, kind: input, shape index: {}]
  %s4 = inlined_call_operand.vmem [shape: f32[1,32], index: 4, kind: input, shape index: {}]
  %s5 = inlined_call_operand.hbm [shape: f32[32,256], index: 5, kind: input, shape index: {}]
  %s6 = inlined_call_operand.vmem [shape: f32[1,256], index: 6, kind: input, shape index: {}]
  %s7 = inlined_call_operand.hbm [shape: f32[16,256], index: 7, kind: output, shape index: {}]
  %s8 = sld [smem:[#allocation0]]
  $region54: #{tpu_custom_call.1} parent=0
    _
  %s10 = ssub.s32 1, %s8
  %s11 = scalar_select 0, %s10, %s8
  $region1: #{tpu_custom_call.1} parent=0
    #allocation2 [shape = 'u8[8192]{0}', space=vmem, size = 0x2000, scoped, tag = 'input window, operand 0, single buffered']
    #allocation3 [shape = 's32[1]{0}', space=sflag, size = 0x4, scoped, tag = 'scoped memory for tpu_custom_call.1']
    #allocation4 [shape = 's32[1]{0}', space=sflag, size = 0x4, scoped, tag = 'scoped memory for tpu_custom_call.1']
    #allocation5 [shape = 'u8[16384]{0}', space=vmem, size = 0x4000, scoped, tag = 'input window, operand 1, single buffered']
    #allocation6 [shape = 's32[1]{0}', space=sflag, size = 0x4, scoped, tag = 'scoped memory for tpu_custom_call.1']
    #allocation7 [shape = 'u8[16384]{0}', space=vmem, size = 0x4000, scoped, tag = 'input window, operand 3, single buffered']
    #allocation8 [shape = 'u8[32768]{0}', space=vmem, size = 0x8000, scoped, tag = 'input window, operand 5, single buffered']
    #allocation9 [shape = 's32[1]{0}', space=sflag, size = 0x4, scoped, tag = 'scoped memory for tpu_custom_call.1']
    #allocation10 [shape = 'u8[16384]{0}', space=vmem, size = 0x4000, scoped, tag = 'output window, operand 0, single buffered']
    %12 = vsyncpa [#allocation3], 0
    %13 = vsyncpa [#allocation6], 0
    %14 = vsyncpa [#allocation9], 0
    %15 = vsyncpa [#allocation4], 0
    // Predicated region
    $region2: #{tpu_custom_call.1} parent=1 // pred_check
      _
    $region3: #{tpu_custom_call.1} parent=1 // pred_check_branch
      %17 = sbr.rel (0) target = $region5
    $region4: #{tpu_custom_call.1} parent=1 // pred_region
      %s19 = ssub.s32 256, 256
      %20 = vsyncadd [#allocation3], %s19
      %s21 = sshll.u32 [#allocation2], 4
      %s22 = int_to_ptr.vmem [resolvable:$true] %s21
      %27 = dma.hbm_to_vmem [thread:$0]  %s0, 256, %s22, [#allocation3], 128, 128, 8
    $region5: #{tpu_custom_call.1} parent=1 // pred_fallthru
      _
    // Predicated region
    $region6: #{tpu_custom_call.1} parent=1 // pred_check
      _
    $region7: #{tpu_custom_call.1} parent=1 // pred_check_branch
      %29 = sbr.rel (0) target = $region9
    $region8: #{tpu_custom_call.1} parent=1 // pred_region
      %s31 = ssub.s32 512, 512
      %32 = vsyncadd [#allocation6], %s31
      %s33 = sshll.u32 [#allocation5], 4
      %s34 = int_to_ptr.vmem [resolvable:$true] %s33
      %39 = dma.hbm_to_vmem [thread:$0]  %s1, 512, %s34, [#allocation6], 128, 128, 8
    $region9: #{tpu_custom_call.1} parent=1 // pred_fallthru
      _
    // Predicated region
    $region10: #{tpu_custom_call.1} parent=1 // pred_check
      _
    $region11: #{tpu_custom_call.1} parent=1 // pred_check_branch
      %41 = sbr.rel (0) target = $region13
    $region12: #{tpu_custom_call.1} parent=1 // pred_region
      _
    $region13: #{tpu_custom_call.1} parent=1 // pred_fallthru
      _
    // Predicated region
    $region14: #{tpu_custom_call.1} parent=1 // pred_check
      _
    $region15: #{tpu_custom_call.1} parent=1 // pred_check_branch
      %43 = sbr.rel (0) target = $region17
    $region16: #{tpu_custom_call.1} parent=1 // pred_region
      %s45 = ssub.s32 512, 512
      %46 = vsyncadd [#allocation6], %s45
      %s47 = sshll.u32 [#allocation7], 4
      %s48 = int_to_ptr.vmem [resolvable:$true] %s47
      %53 = dma.hbm_to_vmem [thread:$0]  %s3, 512, %s48, [#allocation6], 128, 128, 8
    $region17: #{tpu_custom_call.1} parent=1 // pred_fallthru
      _
    // Predicated region
    $region18: #{tpu_custom_call.1} parent=1 // pred_check
      _
    $region19: #{tpu_custom_call.1} parent=1 // pred_check_branch
      %55 = sbr.rel (0) target = $region21
    $region20: #{tpu_custom_call.1} parent=1 // pred_region
      _
    $region21: #{tpu_custom_call.1} parent=1 // pred_fallthru
      _
    // Predicated region
    $region22: #{tpu_custom_call.1} parent=1 // pred_check
      _
    $region23: #{tpu_custom_call.1} parent=1 // pred_check_branch
      %57 = sbr.rel (0) target = $region25
    $region24: #{tpu_custom_call.1} parent=1 // pred_region
      %s59 = ssub.s32 1024, 1024
      %60 = vsyncadd [#allocation9], %s59
      %s61 = sshll.u32 [#allocation8], 4
      %s62 = int_to_ptr.vmem [resolvable:$true] %s61
      %67 = dma.hbm_to_vmem [thread:$0]  %s5, 1024, %s62, [#allocation9], 256, 256, 16
    $region25: #{tpu_custom_call.1} parent=1 // pred_fallthru
      _
    // Predicated region
    $region26: #{tpu_custom_call.1} parent=1 // pred_check
      _
    $region27: #{tpu_custom_call.1} parent=1 // pred_check_branch
      %69 = sbr.rel (0) target = $region29
    $region28: #{tpu_custom_call.1} parent=1 // pred_region
      _
    $region29: #{tpu_custom_call.1} parent=1 // pred_fallthru
      _
    // Predicated region
    $region30: #{tpu_custom_call.1} parent=1 // pred_check
      _
    $region31: #{tpu_custom_call.1} parent=1 // pred_check_branch
      %71 = sbr.rel (0) target = $region33
    $region32: #{tpu_custom_call.1} parent=1 // pred_region
      %72 = dma.done [#allocation3], 256
    $region33: #{tpu_custom_call.1} parent=1 // pred_fallthru
      _
    // Predicated region
    $region34: #{tpu_custom_call.1} parent=1 // pred_check
      _
    $region35: #{tpu_custom_call.1} parent=1 // pred_check_branch
      %74 = sbr.rel (0) target = $region37
    $region36: #{tpu_custom_call.1} parent=1 // pred_region
      %75 = dma.done [#allocation6], 512
    $region37: #{tpu_custom_call.1} parent=1 // pred_fallthru
      _
    // Predicated region
    $region38: #{tpu_custom_call.1} parent=1 // pred_check
      _
    $region39: #{tpu_custom_call.1} parent=1 // pred_check_branch
      %77 = sbr.rel (0) target = $region41
    $region40: #{tpu_custom_call.1} parent=1 // pred_region
      %78 = dma.done [#allocation6], 512
    $region41: #{tpu_custom_call.1} parent=1 // pred_fallthru
      _
    // Predicated region
    $region42: #{tpu_custom_call.1} parent=1 // pred_check
      _
    $region43: #{tpu_custom_call.1} parent=1 // pred_check_branch
      %80 = sbr.rel (0) target = $region45
    $region44: #{tpu_custom_call.1} parent=1 // pred_region
      %81 = dma.done [#allocation9], 1024
    $region45: #{tpu_custom_call.1} parent=1 // pred_fallthru
      _
    %v82 = vld [vmem:[#allocation2] sm:$0xff]
    %v83 = vld [vmem:[#allocation2 + $0x8] sm:$0xff]
    %v84 = vld [vmem:[#allocation5] sm:$0xff]
    %v85 = vld [vmem:[#allocation5 + $0x8] sm:$0xff]
    %v86 = vld [vmem:[#allocation5 + $0x10] sm:$0xff]
    %v87 = vld [vmem:[#allocation5 + $0x18] sm:$0xff]
    %v88 = vld [vmem:[%s2] sm:$0x1]
    %v90 = vlaneseq
    %v91 = vshrl.u32 %v90, 7
    %v92 = vsub.s32 0, %v91
    %v93 = vrot.slane %v88, %v92
    %vm95 = vcmask 261120
    %v97 = vsel %vm95, %v82, 0
    %v100 = vsel %vm95, %v83, 0
    %102 = vmatprep.subr.mxu0 0.0
    %103 = vmatpush1.msra.mxu0 0.0
    %104 = vmatprep.subr.mxu0 0.0
    %105 = vmatpush1.msra.mxu0 0.0
    %106 = vmatprep.subr.mxu0 0.0
    %107 = vmatpush1.msra.mxu0 0.0
    %108 = vmatprep.subr.mxu0 0.0
    %109 = vmatpush1.msra.mxu0 0.0
    %110 = vmatprep.subr.mxu0 0.0
    %111 = vmatpush1.msra.mxu0 0.0
    %112 = vmatprep.subr.mxu0 0.0
    %113 = vmatpush1.msra.mxu0 0.0
    %114 = vmatprep.subr.mxu0 0.0
    %115 = vmatpush1.msra.mxu0 0.0
    %116 = vmatprep.subr.mxu0 0.0
    %117 = vmatpush1.msra.mxu0 0.0
    %118 = vmatprep.subr.mxu0 0.0
    %119 = vmatpush1.msra.mxu0 0.0
    %120 = vmatprep.subr.mxu0 0.0
    %121 = vmatpush1.msra.mxu0 0.0
    %122 = vmatprep.subr.mxu0 0.0
    %123 = vmatpush1.msra.mxu0 0.0
    %124 = vmatprep.subr.mxu0 0.0
    %125 = vmatpush1.msra.mxu0 0.0
    %126 = vmatprep.subr.mxu0 0.0
    %127 = vmatpush1.msra.mxu0 %v87
    %128 = vmatprep.subr.mxu0 0.0
    %129 = vmatpush1.msra.mxu0 %v86
    %130 = vmatprep.subr.mxu0 0.0
    %131 = vmatpush1.msra.mxu0 %v85
    %132 = vmatprep.subr.mxu0 0.0
    %133 = vmatpush1.msra.mxu0 %v84
    %134 = vmatprep.subr.mxu0 0.0
    %135 = vmatpush2.msra.mxu0 0.0
    %136 = vmatprep.subr.mxu0 0.0
    %137 = vmatpush2.msra.mxu0 0.0
    %138 = vmatprep.subr.mxu0 0.0
    %139 = vmatpush2.msra.mxu0 0.0
    %140 = vmatprep.subr.mxu0 0.0
    %141 = vmatpush2.msra.mxu0 0.0
    %142 = vmatprep.subr.mxu0 0.0
    %143 = vmatpush2.msra.mxu0 0.0
    %144 = vmatprep.subr.mxu0 0.0
    %145 = vmatpush2.msra.mxu0 0.0
    %146 = vmatprep.subr.mxu0 0.0
    %147 = vmatpush2.msra.mxu0 0.0
    %148 = vmatprep.subr.mxu0 0.0
    %149 = vmatpush2.msra.mxu0 0.0
    %150 = vmatprep.subr.mxu0 0.0
    %151 = vmatpush2.msra.mxu0 0.0
    %152 = vmatprep.subr.mxu0 0.0
    %153 = vmatpush2.msra.mxu0 0.0
    %154 = vmatprep.subr.mxu0 0.0
    %155 = vmatpush2.msra.mxu0 0.0
    %156 = vmatprep.subr.mxu0 0.0
    %157 = vmatpush2.msra.mxu0 0.0
    %158 = vmatprep.subr.mxu0 0.0
    %159 = vmatpush2.msra.mxu0 0.0
    %160 = vmatprep.subr.mxu0 0.0
    %161 = vmatpush2.msra.mxu0 0.0
    %162 = vmatprep.subr.mxu0 0.0
    %163 = vmatpush2.msra.mxu0 0.0
    %164 = vmatprep.subr.mxu0 0.0
    %165 = vmatpush2.msra.mxu0 0.0
    %166 = vmatprep.mubr.f32.mxu0 0.0
    %167 = vmatmul.mubr.f32.gmra.mxu0 %v97
    %v168 = vpop.f32.mrf.mxu0
    %v169 = vadd.f32 %v93, %v168
    %v170 = vpop.f32.mrf.mxu0
    %171 = vmatprep.mubr.f32.mxu0 0.0
    %172 = vmatmul.mubr.f32.gmra.mxu0 %v100
    %v173 = vpop.f32.mrf.mxu0
    %v174 = vadd.f32 %v93, %v173
    %v175 = vpop.f32.mrf.mxu0
    %176 = vdwg.mxu0
    %v177 = vmax.f32 %v169, 0.0
    %v178 = vmax.f32 %v174, 0.0
    %v179 = vld [vmem:[#allocation7] sm:$0xff]
    %v180 = vld [vmem:[#allocation7 + $0x8] sm:$0xff]
    %v181 = vld [vmem:[#allocation7 + $0x10] sm:$0xff]
    %v182 = vld [vmem:[#allocation7 + $0x18] sm:$0xff]
    %v183 = vld [vmem:[%s4] sm:$0x1]
    %v185 = vlaneseq
    %v186 = vshrl.u32 %v185, 7
    %v187 = vsub.s32 0, %v186
    %v188 = vrot.slane %v183, %v187
    %v191 = vsel %vm95, %v177, 0
    %v194 = vsel %vm95, %v178, 0
    %196 = vmatprep.subr.mxu0 0.0
    %197 = vmatpush1.msra.mxu0 0.0
    %198 = vmatprep.subr.mxu0 0.0
    %199 = vmatpush1.msra.mxu0 0.0
    %200 = vmatprep.subr.mxu0 0.0
    %201 = vmatpush1.msra.mxu0 0.0
    %202 = vmatprep.subr.mxu0 0.0
    %203 = vmatpush1.msra.mxu0 0.0
    %204 = vmatprep.subr.mxu0 0.0
    %205 = vmatpush1.msra.mxu0 0.0
    %206 = vmatprep.subr.mxu0 0.0
    %207 = vmatpush1.msra.mxu0 0.0
    %208 = vmatprep.subr.mxu0 0.0
    %209 = vmatpush1.msra.mxu0 0.0
    %210 = vmatprep.subr.mxu0 0.0
    %211 = vmatpush1.msra.mxu0 0.0
    %212 = vmatprep.subr.mxu0 0.0
    %213 = vmatpush1.msra.mxu0 0.0
    %214 = vmatprep.subr.mxu0 0.0
    %215 = vmatpush1.msra.mxu0 0.0
    %216 = vmatprep.subr.mxu0 0.0
    %217 = vmatpush1.msra.mxu0 0.0
    %218 = vmatprep.subr.mxu0 0.0
    %219 = vmatpush1.msra.mxu0 0.0
    %220 = vmatprep.subr.mxu0 0.0
    %221 = vmatpush1.msra.mxu0 %v182
    %222 = vmatprep.subr.mxu0 0.0
    %223 = vmatpush1.msra.mxu0 %v181
    %224 = vmatprep.subr.mxu0 0.0
    %225 = vmatpush1.msra.mxu0 %v180
    %226 = vmatprep.subr.mxu0 0.0
    %227 = vmatpush1.msra.mxu0 %v179
    %228 = vmatprep.subr.mxu0 0.0
    %229 = vmatpush2.msra.mxu0 0.0
    %230 = vmatprep.subr.mxu0 0.0
    %231 = vmatpush2.msra.mxu0 0.0
    %232 = vmatprep.subr.mxu0 0.0
    %233 = vmatpush2.msra.mxu0 0.0
    %234 = vmatprep.subr.mxu0 0.0
    %235 = vmatpush2.msra.mxu0 0.0
    %236 = vmatprep.subr.mxu0 0.0
    %237 = vmatpush2.msra.mxu0 0.0
    %238 = vmatprep.subr.mxu0 0.0
    %239 = vmatpush2.msra.mxu0 0.0
    %240 = vmatprep.subr.mxu0 0.0
    %241 = vmatpush2.msra.mxu0 0.0
    %242 = vmatprep.subr.mxu0 0.0
    %243 = vmatpush2.msra.mxu0 0.0
    %244 = vmatprep.subr.mxu0 0.0
    %245 = vmatpush2.msra.mxu0 0.0
    %246 = vmatprep.subr.mxu0 0.0
    %247 = vmatpush2.msra.mxu0 0.0
    %248 = vmatprep.subr.mxu0 0.0
    %249 = vmatpush2.msra.mxu0 0.0
    %250 = vmatprep.subr.mxu0 0.0
    %251 = vmatpush2.msra.mxu0 0.0
    %252 = vmatprep.subr.mxu0 0.0
    %253 = vmatpush2.msra.mxu0 0.0
    %254 = vmatprep.subr.mxu0 0.0
    %255 = vmatpush2.msra.mxu0 0.0
    %256 = vmatprep.subr.mxu0 0.0
    %257 = vmatpush2.msra.mxu0 0.0
    %258 = vmatprep.subr.mxu0 0.0
    %259 = vmatpush2.msra.mxu0 0.0
    %260 = vmatprep.mubr.f32.mxu0 0.0
    %261 = vmatmul.mubr.f32.gmra.mxu0 %v191
    %v262 = vpop.f32.mrf.mxu0
    %v263 = vadd.f32 %v188, %v262
    %v264 = vpop.f32.mrf.mxu0
    %265 = vmatprep.mubr.f32.mxu0 0.0
    %266 = vmatmul.mubr.f32.gmra.mxu0 %v194
    %v267 = vpop.f32.mrf.mxu0
    %v268 = vadd.f32 %v188, %v267
    %v269 = vpop.f32.mrf.mxu0
    %270 = vdwg.mxu0
    %v271 = vmax.f32 %v263, 0.0
    %v272 = vmax.f32 %v268, 0.0
    %v273 = vld [vmem:[#allocation8] sm:$0xff]
    %v274 = vld [vmem:[#allocation8 + $0x8] sm:$0xff]
    %v275 = vld [vmem:[#allocation8 + $0x10] sm:$0xff]
    %v276 = vld [vmem:[#allocation8 + $0x18] sm:$0xff]
    %v277 = vld [vmem:[#allocation8 + $0x20] sm:$0xff]
    %v278 = vld [vmem:[#allocation8 + $0x28] sm:$0xff]
    %v279 = vld [vmem:[#allocation8 + $0x30] sm:$0xff]
    %v280 = vld [vmem:[#allocation8 + $0x38] sm:$0xff]
    %v281 = vld [vmem:[%s6] sm:$0x3]
    %v283 = vlaneseq
    %v284 = vshrl.u32 %v283, 7
    %v285 = vsub.s32 0, %v284
    %v286 = vrot.slane %v281, %v285
    %v287 = vlaneseq
    %v288 = vshrl.u32 %v287, 7
    %v289 = vsub.s32 1, %v288
    %v290 = vrot.slane %v281, %v289
    %v294 = vsel %vm95, %v271, 0
    %v297 = vsel %vm95, %v272, 0
    %299 = vmatprep.subr.mxu0 0.0
    %300 = vmatpush1.msra.mxu0 0.0
    %301 = vmatprep.subr.mxu0 0.0
    %302 = vmatpush1.msra.mxu0 0.0
    %303 = vmatprep.subr.mxu0 0.0
    %304 = vmatpush1.msra.mxu0 0.0
    %305 = vmatprep.subr.mxu0 0.0
    %306 = vmatpush1.msra.mxu0 0.0
    %307 = vmatprep.subr.mxu0 0.0
    %308 = vmatpush1.msra.mxu0 0.0
    %309 = vmatprep.subr.mxu0 0.0
    %310 = vmatpush1.msra.mxu0 0.0
    %311 = vmatprep.subr.mxu0 0.0
    %312 = vmatpush1.msra.mxu0 0.0
    %313 = vmatprep.subr.mxu0 0.0
    %314 = vmatpush1.msra.mxu0 0.0
    %315 = vmatprep.subr.mxu0 0.0
    %316 = vmatpush1.msra.mxu0 0.0
    %317 = vmatprep.subr.mxu0 0.0
    %318 = vmatpush1.msra.mxu0 0.0
    %319 = vmatprep.subr.mxu0 0.0
    %320 = vmatpush1.msra.mxu0 0.0
    %321 = vmatprep.subr.mxu0 0.0
    %322 = vmatpush1.msra.mxu0 0.0
    %323 = vmatprep.subr.mxu0 %v280
    %324 = vmatpush1.msra.mxu0 %v279
    %325 = vmatprep.subr.mxu0 %v278
    %326 = vmatpush1.msra.mxu0 %v277
    %327 = vmatprep.subr.mxu0 %v276
    %328 = vmatpush1.msra.mxu0 %v275
    %329 = vmatprep.subr.mxu0 %v274
    %330 = vmatpush1.msra.mxu0 %v273
    %331 = vmatprep.subr.mxu0 0.0
    %332 = vmatpush2.msra.mxu0 0.0
    %333 = vmatprep.subr.mxu0 0.0
    %334 = vmatpush2.msra.mxu0 0.0
    %335 = vmatprep.subr.mxu0 0.0
    %336 = vmatpush2.msra.mxu0 0.0
    %337 = vmatprep.subr.mxu0 0.0
    %338 = vmatpush2.msra.mxu0 0.0
    %339 = vmatprep.subr.mxu0 0.0
    %340 = vmatpush2.msra.mxu0 0.0
    %341 = vmatprep.subr.mxu0 0.0
    %342 = vmatpush2.msra.mxu0 0.0
    %343 = vmatprep.subr.mxu0 0.0
    %344 = vmatpush2.msra.mxu0 0.0
    %345 = vmatprep.subr.mxu0 0.0
    %346 = vmatpush2.msra.mxu0 0.0
    %347 = vmatprep.subr.mxu0 0.0
    %348 = vmatpush2.msra.mxu0 0.0
    %349 = vmatprep.subr.mxu0 0.0
    %350 = vmatpush2.msra.mxu0 0.0
    %351 = vmatprep.subr.mxu0 0.0
    %352 = vmatpush2.msra.mxu0 0.0
    %353 = vmatprep.subr.mxu0 0.0
    %354 = vmatpush2.msra.mxu0 0.0
    %355 = vmatprep.subr.mxu0 0.0
    %356 = vmatpush2.msra.mxu0 0.0
    %357 = vmatprep.subr.mxu0 0.0
    %358 = vmatpush2.msra.mxu0 0.0
    %359 = vmatprep.subr.mxu0 0.0
    %360 = vmatpush2.msra.mxu0 0.0
    %361 = vmatprep.subr.mxu0 0.0
    %362 = vmatpush2.msra.mxu0 0.0
    %363 = vmatprep.mubr.f32.mxu0 0.0
    %364 = vmatmul.mubr.f32.gmra.mxu0 %v294
    %v365 = vpop.f32.mrf.mxu0
    %v366 = vadd.f32 %v286, %v365
    %v367 = vpop.f32.mrf.mxu0
    %v368 = vadd.f32 %v290, %v367
    %369 = vmatprep.mubr.f32.mxu0 0.0
    %370 = vmatmul.mubr.f32.gmra.mxu0 %v297
    %v371 = vpop.f32.mrf.mxu0
    %v372 = vadd.f32 %v286, %v371
    %v373 = vpop.f32.mrf.mxu0
    %v374 = vadd.f32 %v290, %v373
    %375 = vdwg.mxu0
    %v376 = vadd.f32 %v366, -2.0
    %v377 = vadd.f32 %v368, -2.0
    %v378 = vadd.f32 %v372, -2.0
    %v379 = vadd.f32 %v374, -2.0
    %v380 = vmax.f32 %v376, 0.0
    %v381 = vmax.f32 %v377, 0.0
    %v382 = vmax.f32 %v378, 0.0
    %v383 = vmax.f32 %v379, 0.0
    %v384 = vand.u32 2147483647, %v376
    %v385 = vand.u32 2147483647, %v377
    %v386 = vand.u32 2147483647, %v378
    %v387 = vand.u32 2147483647, %v379
    %v388 = vsub.f32 0.0, %v384
    %v389 = vsub.f32 0.0, %v385
    %v390 = vsub.f32 0.0, %v386
    %v391 = vsub.f32 0.0, %v387
    %v392 = vmul.f32 %v388, 1.442695
    %v393 = vpow.pop %v392
    %v394 = vmul.f32 %v389, 1.442695
    %v395 = vpow.pop %v394
    %v396 = vmul.f32 %v390, 1.442695
    %v397 = vpow.pop %v396
    %v398 = vmul.f32 %v391, 1.442695
    %v399 = vpow.pop %v398
    %v400 = vadd.f32 %v393, 1.0
    %v401 = vlog2.pop %v400
    %v402 = vmul.f32 %v401, 0.6931472
    %v403 = vmul.f32 -0.5, %v393
    %v404 = vadd.f32 %v403, 1.0
    %v405 = vmul.f32 %v404, %v393
    %v406 = vand.u32 2147483647, %v393
    %vm407 = vcmp.lt.f32.partialorder %v406, 0.0004427343
    %v408 = vsel %vm407, %v405, %v402
    %v409 = vadd.f32 %v395, 1.0
    %v410 = vlog2.pop %v409
    %v411 = vmul.f32 %v410, 0.6931472
    %v412 = vmul.f32 -0.5, %v395
    %v413 = vadd.f32 %v412, 1.0
    %v414 = vmul.f32 %v413, %v395
    %v415 = vand.u32 2147483647, %v395
    %vm416 = vcmp.lt.f32.partialorder %v415, 0.0004427343
    %v417 = vsel %vm416, %v414, %v411
    %v418 = vadd.f32 %v397, 1.0
    %v419 = vlog2.pop %v418
    %v420 = vmul.f32 %v419, 0.6931472
    %v421 = vmul.f32 -0.5, %v397
    %v422 = vadd.f32 %v421, 1.0
    %v423 = vmul.f32 %v422, %v397
    %v424 = vand.u32 2147483647, %v397
    %vm425 = vcmp.lt.f32.partialorder %v424, 0.0004427343
    %v426 = vsel %vm425, %v423, %v420
    %v427 = vadd.f32 %v399, 1.0
    %v428 = vlog2.pop %v427
    %v429 = vmul.f32 %v428, 0.6931472
    %v430 = vmul.f32 -0.5, %v399
    %v431 = vadd.f32 %v430, 1.0
    %v432 = vmul.f32 %v431, %v399
    %v433 = vand.u32 2147483647, %v399
    %vm434 = vcmp.lt.f32.partialorder %v433, 0.0004427343
    %v435 = vsel %vm434, %v432, %v429
    %v436 = vadd.f32 %v380, %v408
    %v437 = vadd.f32 %v381, %v417
    %v438 = vadd.f32 %v382, %v426
    %v439 = vadd.f32 %v383, %v435
    %440 = vst [vmem:[#allocation10] sm:$0xff] %v436
    %441 = vst [vmem:[#allocation10 + $0x8] sm:$0xff] %v437
    %442 = vst [vmem:[#allocation10 + $0x10] sm:$0xff] %v438
    %443 = vst [vmem:[#allocation10 + $0x18] sm:$0xff] %v439
    // Predicated region
    $region46: #{tpu_custom_call.1} parent=1 // pred_check
      _
    $region47: #{tpu_custom_call.1} parent=1 // pred_check_branch
      %445 = sbr.rel (0) target = $region49
    $region48: #{tpu_custom_call.1} parent=1 // pred_region
      %s447 = ssub.s32 512, 512
      %448 = vsyncadd [#allocation4], %s447
      %s449 = sshll.u32 [#allocation10], 4
      %s450 = int_to_ptr.vmem [resolvable:$true] %s449
      %455 = dma.vmem_to_hbm [thread:$0]  %s450, 512, %s7, [#allocation4], 256, 256, 16
    $region49: #{tpu_custom_call.1} parent=1 // pred_fallthru
      _
    // Predicated region
    $region50: #{tpu_custom_call.1} parent=1 // pred_check
      _
    $region51: #{tpu_custom_call.1} parent=1 // pred_check_branch
      %457 = sbr.rel (0) target = $region53
    $region52: #{tpu_custom_call.1} parent=1 // pred_region
      %458 = dma.done [#allocation4], 512
    $region53: #{tpu_custom_call.1} parent=1 // pred_fallthru
      _
    %459 = vsyncpa [#allocation3], 1
    %460 = vsyncpa [#allocation6], 1
    %461 = vsyncpa [#allocation9], 1
    %462 = vsyncpa [#allocation4], 1

</llo_original>
